<compile_context>
chip_gen: v6e
topology: v6e:2x2x1
jax: 0.10.0
libtpu: 0.0.40
codegen_flags: <defaults>
</compile_context>

<pallas_src>
import jax
import jax.numpy as jnp
from jax.experimental import pallas as pl
from jax.experimental.pallas import tpu as pltpu


def _round_up(x, m):
    return (x + m - 1) // m * m


def _sublanes(itemsize):
    return 8 if itemsize >= 4 else (16 if itemsize == 2 else 32)


def _make_kernel(acc_in_out):
    """Build the fused MLP kernel.

    Grid: (i: batch tile, k: hidden slice, j: output tile), j innermost.
    Scratch: h (TM, TK) in compute dtype; optionally acc (nj, TM, TN) f32.
    """

    def kernel(x_ref, w1_ref, b1_ref, w2_ref, b2_ref, out_ref, *scratch):
        h_ref = scratch[0]
        k = pl.program_id(1)  # hidden slice (reduction for fc2)
        j = pl.program_id(2)  # output tile

        # fc1 for this (batch tile, hidden slice): computed once per (i, k)
        # and reused for every output tile j -> no fc1 recompute, W1 streamed
        # once per batch tile.
        @pl.when(j == 0)
        def _():
            h = jnp.dot(x_ref[...], w1_ref[...],
                        preferred_element_type=jnp.float32)
            h_ref[...] = jnp.maximum(h + b1_ref[...], 0.0).astype(h_ref.dtype)

        # fc2 contribution of this hidden slice for output tile j.
        contrib = jnp.dot(h_ref[...], w2_ref[...],
                          preferred_element_type=jnp.float32)

        if acc_in_out:
            # f32 output, single output tile: the out block is resident across
            # the hidden axis k, so accumulate directly into it (no scratch).
            @pl.when(k == 0)
            def _():
                out_ref[...] = contrib + b2_ref[...]

            @pl.when(k != 0)
            def _():
                out_ref[...] += contrib
        else:
            acc_ref = scratch[1]  # (nj, TM, TN) f32, persists across k and j

            @pl.when(k == 0)
            def _():
                acc_ref[j] = contrib

            @pl.when(k != 0)
            def _():
                acc_ref[j] += contrib

            @pl.when(k == pl.num_programs(1) - 1)
            def _():
                out_ref[...] = (acc_ref[j] + b2_ref[...]).astype(out_ref.dtype)

    return kernel


def make_mlp_forward(w1, b1, w2, b2, *, compute_dtype=jnp.bfloat16,
                     out_dtype=None, tm=256, tk=512, tn=512):
    """Pad/cast the weights once, pick VMEM-budgeted tiles, return forward(x).

    w1: [I, H], b1: [H], w2: [H, O], b2: [O]. forward(x): [..., I] -> [..., O].
    """
    I, H = w1.shape
    Hw, O = w2.shape
    assert Hw == H and b1.shape == (H,) and b2.shape == (O,)

    c_dt = jnp.dtype(compute_dtype)
    c_sz = c_dt.itemsize

    # Per-TensorCore VMEM budget (v5e/v6e: 128 MiB, v7x: 64 MiB).
    try:
        vmem_cap = int(pltpu.get_tpu_info().vmem_capacity_bytes)
    except Exception:
        vmem_cap = 64 << 20  # v7x-safe fallback
    budget = int(vmem_cap * 0.85)

    IP = _round_up(I, 128)
    TK = min(_round_up(tk, 128), _round_up(H, 128))
    TN = min(_round_up(tn, 128), _round_up(O, 128))
    TM = max(int(tm), 8)

    def ws_bytes(tm_, tk_, tn_):
        opp = _round_up(O, tn_)
        return (
            2 * (tm_ * IP * c_sz        # x tile (double buffered)
                 + IP * tk_ * c_sz      # W1 hidden slice
                 + 8 * tk_ * 4          # b1 slice (f32)
                 + tk_ * tn_ * c_sz     # W2 tile
                 + 8 * tn_ * 4          # b2 tile (f32)
                 + tm_ * tn_ * 4)       # out tile (f32 worst case)
            + tm_ * tk_ * c_sz          # h scratch
            + tm_ * opp * 4             # f32 accumulator (worst case)
        )

    # Shrink tiles until the double-buffered working set fits the VMEM budget.
    for _ in range(32):
        if ws_bytes(TM, TK, TN) <= budget:
            break
        if TK > 256:
            TK = max(256, (TK // 2) // 128 * 128)
        elif TN > 256:
            TN = max(256, (TN // 2) // 128 * 128)
        elif TM > 64:
            TM //= 2
        elif TK > 128:
            TK = 128
        elif TN > 128:
            TN = 128
        else:
            break  # TODO(synk): tile the input dim I for extreme I*H on tiny VMEM.

    Hp = _round_up(H, TK)
    Op = _round_up(O, TN)
    nk = Hp // TK
    nj = Op // TN
    tm_cap = TM
    vmem_limit = budget

    # Pad + cast the weights ONCE (not per forward call).  Zero padding
    # contributes nothing to either matmul; biases stay f32 for the adds.
    w1p = jnp.pad(w1.astype(c_dt), ((0, IP - I), (0, Hp - H)))
    b1p = jnp.pad(b1.astype(jnp.float32).reshape(1, H), ((0, 0), (0, Hp - H)))
    w2p = jnp.pad(w2.astype(c_dt), ((0, Hp - H), (0, Op - O)))
    b2p = jnp.pad(b2.astype(jnp.float32).reshape(1, O), ((0, 0), (0, Op - O)))

    o_dt = jnp.dtype(out_dtype) if out_dtype is not None else None

    @jax.jit
    def _fwd(x2, w1p_, b1p_, w2p_, b2p_):
        B = x2.shape[0]
        odt = o_dt if o_dt is not None else x2.dtype
        o_sz = jnp.dtype(odt).itemsize
        sub = max(_sublanes(c_sz), _sublanes(o_sz))

        TMb = _round_up(max(min(tm_cap, _round_up(B, sub)), sub), sub)
        Bp = _round_up(B, TMb)
        ni = Bp // TMb

        xp = jnp.pad(x2.astype(c_dt), ((0, Bp - B), (0, IP - I)))

        acc_in_out = (jnp.dtype(odt) == jnp.dtype(jnp.float32)) and (nj == 1)
        scratch = [pltpu.VMEM((TMb, TK), c_dt)]
        if not acc_in_out:
            scratch.append(pltpu.VMEM((nj, TMb, TN), jnp.float32))

        cost = pl.CostEstimate(
            flops=int(2 * B * (I * H + H * O)),
            transcendentals=0,
            bytes_accessed=int(B * I * c_sz + I * H * c_sz + H * 4
                               + H * O * c_sz + O * 4 + B * O * o_sz),
        )

        out = pl.pallas_call(
            _make_kernel(acc_in_out),
            out_shape=jax.ShapeDtypeStruct((Bp, Op), odt),
            grid_spec=pltpu.PrefetchScalarGridSpec(
                num_scalar_prefetch=0,
                grid=(ni, nk, nj),
                in_specs=[
                    pl.BlockSpec((TMb, IP), lambda i, k, j: (i, 0)),  # x
                    pl.BlockSpec((IP, TK), lambda i, k, j: (0, k)),   # W1 slice
                    pl.BlockSpec((1, TK), lambda i, k, j: (0, k)),    # b1 slice
                    pl.BlockSpec((TK, TN), lambda i, k, j: (k, j)),   # W2 tile
                    pl.BlockSpec((1, TN), lambda i, k, j: (0, j)),    # b2 tile
                ],
                out_specs=pl.BlockSpec((TMb, TN), lambda i, k, j: (i, j)),
                scratch_shapes=scratch,
            ),
            compiler_params=pltpu.CompilerParams(
                dimension_semantics=("parallel", "arbitrary", "arbitrary"),
                vmem_limit_bytes=vmem_limit,
            ),
            cost_estimate=cost,
        )(xp, w1p_, b1p_, w2p_, b2p_)

        return out[:B, :O]

    def forward(x):
        assert x.shape[-1] == I, (x.shape, I)
        lead = x.shape[:-1]
        x2 = x.reshape(-1, I)
        y = _fwd(x2, w1p, b1p, w2p, b2p)
        return y.reshape(*lead, O)

    return forward


def init_mlp_params(key, input_size, hidden_size, output_size, dtype=jnp.float32):
    """nn.Linear-style uniform(-1/sqrt(fan_in), 1/sqrt(fan_in)); W stored [in, out]."""
    k1, k2, k3, k4 = jax.random.split(key, 4)
    lim1 = 1.0 / (input_size ** 0.5)
    lim2 = 1.0 / (hidden_size ** 0.5)
    w1 = jax.random.uniform(k1, (input_size, hidden_size), dtype, -lim1, lim1)
    b1 = jax.random.uniform(k2, (hidden_size,), dtype, -lim1, lim1)
    w2 = jax.random.uniform(k3, (hidden_size, output_size), dtype, -lim2, lim2)
    b2 = jax.random.uniform(k4, (output_size,), dtype, -lim2, lim2)
    return w1, b1, w2, b2


if __name__ == "__main__":
    root = jax.random.PRNGKey(0)
    k_small, k_big = jax.random.split(root)

    # --- Small-shape test (single tile everywhere) -------------------------
    batch, input_size, hidden_size, output_size = 8, 32, 64, 16
    kx, kp = jax.random.split(k_small)
    x = jax.random.normal(kx, (batch, input_size), jnp.float32)
    w1, b1, w2, b2 = init_mlp_params(kp, input_size, hidden_size, output_size)
    ref = jnp.maximum(x @ w1 + b1, 0.0) @ w2 + b2

    # f32 reference path (exact math; slow path on the bf16 MXU).
    fwd_f32 = make_mlp_forward(w1, b1, w2, b2, compute_dtype=jnp.float32)
    out_f32 = fwd_f32(x)
    jax.block_until_ready(out_f32)
    assert out_f32.shape == (batch, output_size)
    assert jnp.allclose(out_f32, ref, atol=1e-5, rtol=1e-5)

    # Default bf16 MXU path (weights stored bf16, f32 accumulation).
    fwd_bf16 = make_mlp_forward(w1, b1, w2, b2)
    out_bf16 = fwd_bf16(x.astype(jnp.bfloat16))
    jax.block_until_ready(out_bf16)
    assert out_bf16.shape == (batch, output_size)
    assert jnp.allclose(out_bf16.astype(jnp.float32), ref, atol=5e-2, rtol=5e-2)

    # --- Multi-tile test: ni=2, nk=3, nj=3 with padding on every dim --------
    B2, I2, H2, O2 = 48, 200, 1100, 300
    kx2, kp2 = jax.random.split(k_big)
    x2 = jax.random.normal(kx2, (B2, I2), jnp.float32)
    p2 = init_mlp_params(kp2, I2, H2, O2)
    ref2 = jnp.maximum(x2 @ p2[0] + p2[1], 0.0) @ p2[2] + p2[3]

    fwd2 = make_mlp_forward(*p2, compute_dtype=jnp.float32, tm=32, tk=512, tn=128)
    out2 = fwd2(x2)
    jax.block_until_ready(out2)
    assert out2.shape == (B2, O2)
    assert jnp.allclose(out2, ref2, atol=5e-3, rtol=5e-3)

    print("KERNEL_OK")
</pallas_src>

<mosaic_0001>
module attributes {stable_mosaic.version = 11 : i64} {
  func.func @kernel(%arg0: i32, %arg1: i32, %arg2: i32, %arg3: memref<8x128xf32, #tpu.memory_space<vmem>>, %arg4: memref<128x128xf32, #tpu.memory_space<vmem>>, %arg5: memref<1x128xf32, #tpu.memory_space<vmem>>, %arg6: memref<128x128xf32, #tpu.memory_space<vmem>>, %arg7: memref<1x128xf32, #tpu.memory_space<vmem>>, %arg8: memref<8x128xf32, #tpu.memory_space<vmem>>, %arg9: memref<8x128xf32, #tpu.memory_space<vmem>>) attributes {dimension_semantics = [#tpu.dimension_semantics<parallel>, #tpu.dimension_semantics<arbitrary>, #tpu.dimension_semantics<arbitrary>], iteration_bounds = array<i64: 1, 1, 1>, scalar_prefetch = 0 : i64, scratch_operands = 1 : i64, tpu.core_type = #tpu.core_type<tc>, window_params = [{transform_indices = @transform_0, window_bounds = array<i64: 8, 128>}, {transform_indices = @transform_1, window_bounds = array<i64: 128, 128>}, {transform_indices = @transform_2, window_bounds = array<i64: 1, 128>}, {transform_indices = @transform_3, window_bounds = array<i64: 128, 128>}, {transform_indices = @transform_4, window_bounds = array<i64: 1, 128>}, {transform_indices = @transform_5, window_bounds = array<i64: 8, 128>}]} {
    %c0_i32 = arith.constant 0 : i32
    %0 = arith.cmpi eq, %arg2, %c0_i32 : i32
    %1 = arith.extui %0 : i1 to i32
    %c0_i32_0 = arith.constant 0 : i32
    %2 = arith.cmpi ne, %1, %c0_i32_0 : i32
    scf.if %2 {
      %c0_8 = arith.constant 0 : index
      %c0_9 = arith.constant 0 : index
      %12 = vector.load %arg3[%c0_8, %c0_9] : memref<8x128xf32, #tpu.memory_space<vmem>>, vector<8x128xf32>
      %c0_10 = arith.constant 0 : index
      %c0_11 = arith.constant 0 : index
      %13 = vector.load %arg4[%c0_10, %c0_11] : memref<128x128xf32, #tpu.memory_space<vmem>>, vector<128x128xf32>
      %cst_12 = arith.constant dense<0.000000e+00> : vector<8x128xf32>
      %14 = tpu.matmul %12, %13, %cst_12 {dimension_numbers = #tpu.dot_dimension_numbers<[1], [0], [0], [1], [0, 0, 1, 1], [], []>} : vector<8x128xf32>, vector<128x128xf32>, vector<8x128xf32> -> vector<8x128xf32>
      %c0_13 = arith.constant 0 : index
      %c0_14 = arith.constant 0 : index
      %15 = vector.load %arg5[%c0_13, %c0_14] : memref<1x128xf32, #tpu.memory_space<vmem>>, vector<1x128xf32>
      %16 = vector.broadcast %15 : vector<1x128xf32> to vector<8x128xf32>
      %17 = arith.addf %14, %16 : vector<8x128xf32>
      %cst_15 = arith.constant 0.000000e+00 : f32
      %18 = vector.broadcast %cst_15 : f32 to vector<8x128xf32>
      %19 = arith.maximumf %17, %18 : vector<8x128xf32>
      %c0_16 = arith.constant 0 : index
      %c0_17 = arith.constant 0 : index
      %20 = vector.load %arg9[%c0_16, %c0_17] : memref<8x128xf32, #tpu.memory_space<vmem>>, vector<8x128xf32>
      tpu.vector_store %arg9[%c0_16, %c0_17], %19 {strides = array<i32>} : memref<8x128xf32, #tpu.memory_space<vmem>>, vector<8x128xf32>,
    } else {
    }
    %c0 = arith.constant 0 : index
    %c0_1 = arith.constant 0 : index
    %3 = vector.load %arg9[%c0, %c0_1] : memref<8x128xf32, #tpu.memory_space<vmem>>, vector<8x128xf32>
    %c0_2 = arith.constant 0 : index
    %c0_3 = arith.constant 0 : index
    %4 = vector.load %arg6[%c0_2, %c0_3] : memref<128x128xf32, #tpu.memory_space<vmem>>, vector<128x128xf32>
    %cst = arith.constant dense<0.000000e+00> : vector<8x128xf32>
    %5 = tpu.matmul %3, %4, %cst {dimension_numbers = #tpu.dot_dimension_numbers<[1], [0], [0], [1], [0, 0, 1, 1], [], []>} : vector<8x128xf32>, vector<128x128xf32>, vector<8x128xf32> -> vector<8x128xf32>
    %c0_i32_4 = arith.constant 0 : i32
    %6 = arith.cmpi eq, %arg1, %c0_i32_4 : i32
    %7 = arith.extui %6 : i1 to i32
    %c0_i32_5 = arith.constant 0 : i32
    %8 = arith.cmpi ne, %7, %c0_i32_5 : i32
    scf.if %8 {
      %c0_8 = arith.constant 0 : index
      %c0_9 = arith.constant 0 : index
      %12 = vector.load %arg7[%c0_8, %c0_9] : memref<1x128xf32, #tpu.memory_space<vmem>>, vector<1x128xf32>
      %13 = vector.broadcast %12 : vector<1x128xf32> to vector<8x128xf32>
      %14 = arith.addf %5, %13 : vector<8x128xf32>
      %c0_10 = arith.constant 0 : index
      %c0_11 = arith.constant 0 : index
      %15 = vector.load %arg8[%c0_10, %c0_11] : memref<8x128xf32, #tpu.memory_space<vmem>>, vector<8x128xf32>
      tpu.vector_store %arg8[%c0_10, %c0_11], %14 {strides = array<i32>} : memref<8x128xf32, #tpu.memory_space<vmem>>, vector<8x128xf32>,
    } else {
    }
    %c0_i32_6 = arith.constant 0 : i32
    %9 = arith.cmpi ne, %arg1, %c0_i32_6 : i32
    %10 = arith.extui %9 : i1 to i32
    %c0_i32_7 = arith.constant 0 : i32
    %11 = arith.cmpi ne, %10, %c0_i32_7 : i32
    scf.if %11 {
      %c0_8 = arith.constant 0 : index
      %c0_9 = arith.constant 0 : index
      %12 = vector.load %arg8[%c0_8, %c0_9] : memref<8x128xf32, #tpu.memory_space<vmem>>, vector<8x128xf32>
      %13 = arith.addf %12, %5 : vector<8x128xf32>
      %c0_10 = arith.constant 0 : index
      %c0_11 = arith.constant 0 : index
      %14 = vector.load %arg8[%c0_10, %c0_11] : memref<8x128xf32, #tpu.memory_space<vmem>>, vector<8x128xf32>
      tpu.vector_store %arg8[%c0_10, %c0_11], %13 {strides = array<i32>} : memref<8x128xf32, #tpu.memory_space<vmem>>, vector<8x128xf32>,
    } else {
    }
    return
  }
  func.func @transform_0(%arg0: i32, %arg1: i32, %arg2: i32) -> (i32, i32) {
    %c0_i32 = arith.constant 0 : i32
    %c0_i32_0 = arith.constant 0 : i32
    return %arg0, %c0_i32 : i32, i32
  }
  func.func @transform_1(%arg0: i32, %arg1: i32, %arg2: i32) -> (i32, i32) {
    %c0_i32 = arith.constant 0 : i32
    %c0_i32_0 = arith.constant 0 : i32
    return %c0_i32, %arg1 : i32, i32
  }
  func.func @transform_2(%arg0: i32, %arg1: i32, %arg2: i32) -> (i32, i32) {
    %c0_i32 = arith.constant 0 : i32
    %c0_i32_0 = arith.constant 0 : i32
    return %c0_i32, %arg1 : i32, i32
  }
  func.func @transform_3(%arg0: i32, %arg1: i32, %arg2: i32) -> (i32, i32) {
    %c0_i32 = arith.constant 0 : i32
    return %arg1, %arg2 : i32, i32
  }
  func.func @transform_4(%arg0: i32, %arg1: i32, %arg2: i32) -> (i32, i32) {
    %c0_i32 = arith.constant 0 : i32
    %c0_i32_0 = arith.constant 0 : i32
    return %c0_i32, %arg2 : i32, i32
  }
  func.func @transform_5(%arg0: i32, %arg1: i32, %arg2: i32) -> (i32, i32) {
    %c0_i32 = arith.constant 0 : i32
    return %arg0, %arg2 : i32, i32
  }
}

</mosaic_0001>

<llo_original>
// kernel: _fwd.1
$region0: #{_fwd.1}
  #allocation0 [shape = 'u32[]', space=smem, size = 0x4, offset = 0x4, fixed_abs, tag = 'smem constant byte address 0x4 - core index']
  #allocation1 [shape = 'u32[144,128]{1,0:T(1,128)}', space=vmem, size = 0x12000, scoped, tag = 'internal scratch']
  #allocation2 [shape = 'f32[8,128]{1,0:T(8,128)}', space=vmem, size = 0x1000, scoped, tag = 'scratch operand']
  %s0 = inlined_call_operand.vmem [shape: f32[8,128], index: 0, kind: input, shape index: {}]
  %s1 = inlined_call_operand.hbm [shape: f32[128,128], index: 1, kind: input, shape index: {}]
  %s2 = inlined_call_operand.vmem [shape: f32[1,128], index: 2, kind: input, shape index: {}]
  %s3 = inlined_call_operand.hbm [shape: f32[128,128], index: 3, kind: input, shape index: {}]
  %s4 = inlined_call_operand.vmem [shape: f32[1,128], index: 4, kind: input, shape index: {}]
  %s5 = inlined_call_operand.hbm [shape: f32[8,128], index: 5, kind: output, shape index: {}]
  %s6 = sld [smem:[#allocation0]]
  $region50: #{_fwd.1} parent=0
    _
  %s8 = ssub.s32 1, %s6
  %s9 = scalar_select 0, %s8, %s6
  $region1: #{_fwd.1} parent=0
    #allocation3 [shape = 'u8[65536]{0}', space=vmem, size = 0x10000, scoped, tag = 'input window, operand 1, single buffered']
    #allocation4 [shape = 's32[1]{0}', space=sflag, size = 0x4, scoped, tag = 'scoped memory for _fwd.1']
    #allocation5 [shape = 's32[1]{0}', space=sflag, size = 0x4, scoped, tag = 'scoped memory for _fwd.1']
    #allocation6 [shape = 'u8[65536]{0}', space=vmem, size = 0x10000, scoped, tag = 'input window, operand 3, single buffered']
    #allocation7 [shape = 's32[1]{0}', space=sflag, size = 0x4, scoped, tag = 'scoped memory for _fwd.1']
    #allocation8 [shape = 'u8[4096]{0}', space=vmem, size = 0x1000, scoped, tag = 'output window, operand 0, single buffered']
    %10 = vsyncpa [#allocation4], 0
    %11 = vsyncpa [#allocation7], 0
    %12 = vsyncpa [#allocation5], 0
    // Predicated region
    $region2: #{_fwd.1} parent=1 // pred_check
      _
    $region3: #{_fwd.1} parent=1 // pred_check_branch
      %14 = sbr.rel (0) target = $region5
    $region4: #{_fwd.1} parent=1 // pred_region
      _
    $region5: #{_fwd.1} parent=1 // pred_fallthru
      _
    // Predicated region
    $region6: #{_fwd.1} parent=1 // pred_check
      _
    $region7: #{_fwd.1} parent=1 // pred_check_branch
      %16 = sbr.rel (0) target = $region9
    $region8: #{_fwd.1} parent=1 // pred_region
      %s18 = ssub.s32 2048, 2048
      %19 = vsyncadd [#allocation4], %s18
      %s20 = sshll.u32 [#allocation3], 4
      %s21 = int_to_ptr.vmem [resolvable:$true] %s20
      %26 = dma.hbm_to_vmem [thread:$0]  %s1, 2048, %s21, [#allocation4], 128, 128, 8
    $region9: #{_fwd.1} parent=1 // pred_fallthru
      _
    // Predicated region
    $region10: #{_fwd.1} parent=1 // pred_check
      _
    $region11: #{_fwd.1} parent=1 // pred_check_branch
      %28 = sbr.rel (0) target = $region13
    $region12: #{_fwd.1} parent=1 // pred_region
      _
    $region13: #{_fwd.1} parent=1 // pred_fallthru
      _
    // Predicated region
    $region14: #{_fwd.1} parent=1 // pred_check
      _
    $region15: #{_fwd.1} parent=1 // pred_check_branch
      %30 = sbr.rel (0) target = $region17
    $region16: #{_fwd.1} parent=1 // pred_region
      %s32 = ssub.s32 2048, 2048
      %33 = vsyncadd [#allocation7], %s32
      %s34 = sshll.u32 [#allocation6], 4
      %s35 = int_to_ptr.vmem [resolvable:$true] %s34
      %40 = dma.hbm_to_vmem [thread:$0]  %s3, 2048, %s35, [#allocation7], 128, 128, 8
    $region17: #{_fwd.1} parent=1 // pred_fallthru
      _
    // Predicated region
    $region18: #{_fwd.1} parent=1 // pred_check
      _
    $region19: #{_fwd.1} parent=1 // pred_check_branch
      %42 = sbr.rel (0) target = $region21
    $region20: #{_fwd.1} parent=1 // pred_region
      _
    $region21: #{_fwd.1} parent=1 // pred_fallthru
      _
    // Predicated region
    $region22: #{_fwd.1} parent=1 // pred_check
      _
    $region23: #{_fwd.1} parent=1 // pred_check_branch
      %44 = sbr.rel (0) target = $region25
    $region24: #{_fwd.1} parent=1 // pred_region
      %45 = dma.done [#allocation4], 2048
    $region25: #{_fwd.1} parent=1 // pred_fallthru
      _
    // Predicated region
    $region26: #{_fwd.1} parent=1 // pred_check
      _
    $region27: #{_fwd.1} parent=1 // pred_check_branch
      %47 = sbr.rel (0) target = $region29
    $region28: #{_fwd.1} parent=1 // pred_region
      %48 = dma.done [#allocation7], 2048
    $region29: #{_fwd.1} parent=1 // pred_fallthru
      _
    %p49 = scmp.eq.s32.totalorder 0, 0
    // Predicated region
    $region30: #{_fwd.1} parent=1 // pred_check
      %p50 = pneg %p49
    $region31: #{_fwd.1} parent=1 // pred_check_branch
      %52 = sbr.rel (%p50) target = $region33
    $region32: #{_fwd.1} parent=1 // pred_region
      %v53 = vld [vmem:[%s0] sm:$0xff]
      %v54 = vld [vmem:[#allocation3] sm:$0xff]
      %v55 = vld [vmem:[#allocation3 + $0x8] sm:$0xff]
      %v56 = vld [vmem:[#allocation3 + $0x10] sm:$0xff]
      %v57 = vld [vmem:[#allocation3 + $0x18] sm:$0xff]
      %v58 = vld [vmem:[#allocation3 + $0x20] sm:$0xff]
      %v59 = vld [vmem:[#allocation3 + $0x28] sm:$0xff]
      %v60 = vld [vmem:[#allocation3 + $0x30] sm:$0xff]
      %v61 = vld [vmem:[#allocation3 + $0x38] sm:$0xff]
      %v62 = vld [vmem:[#allocation3 + $0x40] sm:$0xff]
      %v63 = vld [vmem:[#allocation3 + $0x48] sm:$0xff]
      %v64 = vld [vmem:[#allocation3 + $0x50] sm:$0xff]
      %v65 = vld [vmem:[#allocation3 + $0x58] sm:$0xff]
      %v66 = vld [vmem:[#allocation3 + $0x60] sm:$0xff]
      %v67 = vld [vmem:[#allocation3 + $0x68] sm:$0xff]
      %v68 = vld [vmem:[#allocation3 + $0x70] sm:$0xff]
      %v69 = vld [vmem:[#allocation3 + $0x78] sm:$0xff]
      %v70 = vld [vmem:[%s2] sm:$0x1]
      %v72 = vlaneseq
      %v73 = vshrl.u32 %v72, 7
      %v74 = vsub.s32 0, %v73
      %v75 = vrot.slane %v70, %v74
      %77 = vmatprep.subr.mxu0 0.0
      %78 = vmatpush1.msra.mxu0 %v69
      %79 = vmatprep.subr.mxu0 0.0
      %80 = vmatpush1.msra.mxu0 %v68
      %81 = vmatprep.subr.mxu0 0.0
      %82 = vmatpush1.msra.mxu0 %v67
      %83 = vmatprep.subr.mxu0 0.0
      %84 = vmatpush1.msra.mxu0 %v66
      %85 = vmatprep.subr.mxu0 0.0
      %86 = vmatpush1.msra.mxu0 %v65
      %87 = vmatprep.subr.mxu0 0.0
      %88 = vmatpush1.msra.mxu0 %v64
      %89 = vmatprep.subr.mxu0 0.0
      %90 = vmatpush1.msra.mxu0 %v63
      %91 = vmatprep.subr.mxu0 0.0
      %92 = vmatpush1.msra.mxu0 %v62
      %93 = vmatprep.subr.mxu0 0.0
      %94 = vmatpush1.msra.mxu0 %v61
      %95 = vmatprep.subr.mxu0 0.0
      %96 = vmatpush1.msra.mxu0 %v60
      %97 = vmatprep.subr.mxu0 0.0
      %98 = vmatpush1.msra.mxu0 %v59
      %99 = vmatprep.subr.mxu0 0.0
      %100 = vmatpush1.msra.mxu0 %v58
      %101 = vmatprep.subr.mxu0 0.0
      %102 = vmatpush1.msra.mxu0 %v57
      %103 = vmatprep.subr.mxu0 0.0
      %104 = vmatpush1.msra.mxu0 %v56
      %105 = vmatprep.subr.mxu0 0.0
      %106 = vmatpush1.msra.mxu0 %v55
      %107 = vmatprep.subr.mxu0 0.0
      %108 = vmatpush1.msra.mxu0 %v54
      %109 = vmatprep.subr.mxu0 0.0
      %110 = vmatpush2.msra.mxu0 0.0
      %111 = vmatprep.subr.mxu0 0.0
      %112 = vmatpush2.msra.mxu0 0.0
      %113 = vmatprep.subr.mxu0 0.0
      %114 = vmatpush2.msra.mxu0 0.0
      %115 = vmatprep.subr.mxu0 0.0
      %116 = vmatpush2.msra.mxu0 0.0
      %117 = vmatprep.subr.mxu0 0.0
      %118 = vmatpush2.msra.mxu0 0.0
      %119 = vmatprep.subr.mxu0 0.0
      %120 = vmatpush2.msra.mxu0 0.0
      %121 = vmatprep.subr.mxu0 0.0
      %122 = vmatpush2.msra.mxu0 0.0
      %123 = vmatprep.subr.mxu0 0.0
      %124 = vmatpush2.msra.mxu0 0.0
      %125 = vmatprep.subr.mxu0 0.0
      %126 = vmatpush2.msra.mxu0 0.0
      %127 = vmatprep.subr.mxu0 0.0
      %128 = vmatpush2.msra.mxu0 0.0
      %129 = vmatprep.subr.mxu0 0.0
      %130 = vmatpush2.msra.mxu0 0.0
      %131 = vmatprep.subr.mxu0 0.0
      %132 = vmatpush2.msra.mxu0 0.0
      %133 = vmatprep.subr.mxu0 0.0
      %134 = vmatpush2.msra.mxu0 0.0
      %135 = vmatprep.subr.mxu0 0.0
      %136 = vmatpush2.msra.mxu0 0.0
      %137 = vmatprep.subr.mxu0 0.0
      %138 = vmatpush2.msra.mxu0 0.0
      %139 = vmatprep.subr.mxu0 0.0
      %140 = vmatpush2.msra.mxu0 0.0
      %141 = vmatprep.mubr.f32.mxu0 0.0
      %142 = vmatmul.mubr.f32.gmra.mxu0 %v53
      %v143 = vpop.f32.mrf.mxu0
      %v144 = vadd.f32 %v75, %v143
      %v145 = vpop.f32.mrf.mxu0
      %146 = vdwg.mxu0
      %v147 = vmax.f32 %v144, 0.0
      %148 = vst [vmem:[#allocation2] sm:$0xff] %v147
    $region33: #{_fwd.1} parent=1 // pred_fallthru
      _
    %v149 = vld [vmem:[#allocation2] sm:$0xff]
    %v150 = vld [vmem:[#allocation6] sm:$0xff]
    %v151 = vld [vmem:[#allocation6 + $0x8] sm:$0xff]
    %v152 = vld [vmem:[#allocation6 + $0x10] sm:$0xff]
    %v153 = vld [vmem:[#allocation6 + $0x18] sm:$0xff]
    %v154 = vld [vmem:[#allocation6 + $0x20] sm:$0xff]
    %v155 = vld [vmem:[#allocation6 + $0x28] sm:$0xff]
    %v156 = vld [vmem:[#allocation6 + $0x30] sm:$0xff]
    %v157 = vld [vmem:[#allocation6 + $0x38] sm:$0xff]
    %v158 = vld [vmem:[#allocation6 + $0x40] sm:$0xff]
    %v159 = vld [vmem:[#allocation6 + $0x48] sm:$0xff]
    %v160 = vld [vmem:[#allocation6 + $0x50] sm:$0xff]
    %v161 = vld [vmem:[#allocation6 + $0x58] sm:$0xff]
    %v162 = vld [vmem:[#allocation6 + $0x60] sm:$0xff]
    %v163 = vld [vmem:[#allocation6 + $0x68] sm:$0xff]
    %v164 = vld [vmem:[#allocation6 + $0x70] sm:$0xff]
    %v165 = vld [vmem:[#allocation6 + $0x78] sm:$0xff]
    %166 = vmatprep.subr.mxu0 0.0
    %167 = vmatpush1.msra.mxu0 %v165
    %168 = vmatprep.subr.mxu0 0.0
    %169 = vmatpush1.msra.mxu0 %v164
    %170 = vmatprep.subr.mxu0 0.0
    %171 = vmatpush1.msra.mxu0 %v163
    %172 = vmatprep.subr.mxu0 0.0
    %173 = vmatpush1.msra.mxu0 %v162
    %174 = vmatprep.subr.mxu0 0.0
    %175 = vmatpush1.msra.mxu0 %v161
    %176 = vmatprep.subr.mxu0 0.0
    %177 = vmatpush1.msra.mxu0 %v160
    %178 = vmatprep.subr.mxu0 0.0
    %179 = vmatpush1.msra.mxu0 %v159
    %180 = vmatprep.subr.mxu0 0.0
    %181 = vmatpush1.msra.mxu0 %v158
    %182 = vmatprep.subr.mxu0 0.0
    %183 = vmatpush1.msra.mxu0 %v157
    %184 = vmatprep.subr.mxu0 0.0
    %185 = vmatpush1.msra.mxu0 %v156
    %186 = vmatprep.subr.mxu0 0.0
    %187 = vmatpush1.msra.mxu0 %v155
    %188 = vmatprep.subr.mxu0 0.0
    %189 = vmatpush1.msra.mxu0 %v154
    %190 = vmatprep.subr.mxu0 0.0
    %191 = vmatpush1.msra.mxu0 %v153
    %192 = vmatprep.subr.mxu0 0.0
    %193 = vmatpush1.msra.mxu0 %v152
    %194 = vmatprep.subr.mxu0 0.0
    %195 = vmatpush1.msra.mxu0 %v151
    %196 = vmatprep.subr.mxu0 0.0
    %197 = vmatpush1.msra.mxu0 %v150
    %198 = vmatprep.subr.mxu0 0.0
    %199 = vmatpush2.msra.mxu0 0.0
    %200 = vmatprep.subr.mxu0 0.0
    %201 = vmatpush2.msra.mxu0 0.0
    %202 = vmatprep.subr.mxu0 0.0
    %203 = vmatpush2.msra.mxu0 0.0
    %204 = vmatprep.subr.mxu0 0.0
    %205 = vmatpush2.msra.mxu0 0.0
    %206 = vmatprep.subr.mxu0 0.0
    %207 = vmatpush2.msra.mxu0 0.0
    %208 = vmatprep.subr.mxu0 0.0
    %209 = vmatpush2.msra.mxu0 0.0
    %210 = vmatprep.subr.mxu0 0.0
    %211 = vmatpush2.msra.mxu0 0.0
    %212 = vmatprep.subr.mxu0 0.0
    %213 = vmatpush2.msra.mxu0 0.0
    %214 = vmatprep.subr.mxu0 0.0
    %215 = vmatpush2.msra.mxu0 0.0
    %216 = vmatprep.subr.mxu0 0.0
    %217 = vmatpush2.msra.mxu0 0.0
    %218 = vmatprep.subr.mxu0 0.0
    %219 = vmatpush2.msra.mxu0 0.0
    %220 = vmatprep.subr.mxu0 0.0
    %221 = vmatpush2.msra.mxu0 0.0
    %222 = vmatprep.subr.mxu0 0.0
    %223 = vmatpush2.msra.mxu0 0.0
    %224 = vmatprep.subr.mxu0 0.0
    %225 = vmatpush2.msra.mxu0 0.0
    %226 = vmatprep.subr.mxu0 0.0
    %227 = vmatpush2.msra.mxu0 0.0
    %228 = vmatprep.subr.mxu0 0.0
    %229 = vmatpush2.msra.mxu0 0.0
    %230 = vmatprep.mubr.f32.mxu0 0.0
    %231 = vmatmul.mubr.f32.gmra.mxu0 %v149
    %v232 = vpop.f32.mrf.mxu0
    %v233 = vadd.f32 0.0, %v232
    %v234 = vpop.f32.mrf.mxu0
    %235 = vdwg.mxu0
    %p236 = scmp.eq.s32.totalorder 0, 0
    // Predicated region
    $region34: #{_fwd.1} parent=1 // pred_check
      %p237 = pneg %p236
    $region35: #{_fwd.1} parent=1 // pred_check_branch
      %239 = sbr.rel (%p237) target = $region37
    $region36: #{_fwd.1} parent=1 // pred_region
      %v240 = vld [vmem:[%s4] sm:$0x1]
      %v242 = vlaneseq
      %v243 = vshrl.u32 %v242, 7
      %v244 = vsub.s32 0, %v243
      %v245 = vrot.slane %v240, %v244
      %v247 = vadd.f32 %v233, %v245
      %248 = vst [vmem:[#allocation8] sm:$0xff] %v247
    $region37: #{_fwd.1} parent=1 // pred_fallthru
      _
    %p249 = scmp.ne.s32.totalorder 0, 0
    // Predicated region
    $region38: #{_fwd.1} parent=1 // pred_check
      %p250 = pneg %p249
    $region39: #{_fwd.1} parent=1 // pred_check_branch
      %252 = sbr.rel (%p250) target = $region41
    $region40: #{_fwd.1} parent=1 // pred_region
      %v253 = vld [vmem:[#allocation8] sm:$0xff]
      %v254 = vadd.f32 %v253, %v233
      %255 = vst [vmem:[#allocation8] sm:$0xff] %v254
    $region41: #{_fwd.1} parent=1 // pred_fallthru
      _
    // Predicated region
    $region42: #{_fwd.1} parent=1 // pred_check
      _
    $region43: #{_fwd.1} parent=1 // pred_check_branch
      %257 = sbr.rel (0) target = $region45
    $region44: #{_fwd.1} parent=1 // pred_region
      %s259 = ssub.s32 128, 128
      %260 = vsyncadd [#allocation5], %s259
      %s262 = sshll.u32 [#allocation8], 4
      %s263 = int_to_ptr.vmem [resolvable:$true] %s262
      %265 = dma.vmem_to_hbm [thread:$0]  %s263, 128, %s5, [#allocation5]
    $region45: #{_fwd.1} parent=1 // pred_fallthru
      _
    // Predicated region
    $region46: #{_fwd.1} parent=1 // pred_check
      _
    $region47: #{_fwd.1} parent=1 // pred_check_branch
      %267 = sbr.rel (0) target = $region49
    $region48: #{_fwd.1} parent=1 // pred_region
      %268 = dma.done [#allocation5], 128
    $region49: #{_fwd.1} parent=1 // pred_fallthru
      _
    %269 = vsyncpa [#allocation4], 1
    %270 = vsyncpa [#allocation7], 1
    %271 = vsyncpa [#allocation5], 1

</llo_original>
